<compile_context>
chip_gen: v7x
topology: tpu7x:2x2x1
jax: 0.10.0
libtpu: 0.0.40
codegen_flags: <defaults>
</compile_context>

<pallas_src>
import jax
import jax.numpy as jnp
from jax.experimental import pallas as pl
from jax.experimental.pallas import tpu as pltpu

_MAX_BLOCK_BYTES = 4 * 1024 * 1024      # per-block HBM<->VMEM tile size
_SPLIT_THRESHOLD_BYTES = 2 * 1024 * 1024  # above this, split for megacore
_VMEM_LIMIT_BYTES = 32 * 1024 * 1024


def _identity_kernel(x_ref, o_ref):
    # Identity: straight full-tile VMEM copy (lane-dense, unmasked stores).
    o_ref[...] = x_ref[...]


def _round_up(v, m):
    return ((v + m - 1) // m) * m


def _pick_cols(n):
    # Largest lane-dense width (multiple of 128) that divides n exactly, so
    # the wrapper never needs an extra padding pass over HBM.
    for c in (4096, 2048, 1024, 512, 256, 128):
        if n % c == 0:
            return c
    return None


def dummy_layer_forward(x):
    """Identity forward pass executed through a single Pallas TPU kernel."""
    orig_shape = x.shape
    orig_dtype = x.dtype
    n = x.size
    if n == 0:
        return x

    itemsize = jnp.dtype(orig_dtype).itemsize
    # dtype-aware sublane multiple: 8 rows (f32), 16 (bf16), 32 (int8/fp8).
    sub = max(8, 32 // max(itemsize, 1))

    cols = _pick_cols(n)
    pad = 0
    flat = x.reshape(-1)
    if cols is None:
        # TODO(synk): rare fallback for element counts not divisible by 128 —
        # a single pad pass (never taken for typical NN tensor shapes).
        cols = 128
        pad = _round_up(n, cols) - n
        flat = jnp.pad(flat, (0, pad))

    rows = flat.shape[0] // cols
    x2d = flat.reshape(rows, cols)

    bytes_per_row = cols * itemsize
    total_bytes = rows * bytes_per_row

    if total_bytes <= _MAX_BLOCK_BYTES:
        # Whole slab fits in one block (block == full array dims is legal).
        tile_rows = rows
        # If it is big enough to matter, split into >=2 blocks so v7x can
        # shard the ("parallel",) grid across its two TensorCores.
        if total_bytes > _SPLIT_THRESHOLD_BYTES and rows >= 2 * sub:
            tile_rows = _round_up(pl.cdiv(rows, 2), sub)
    else:
        tile_rows = max(sub, (_MAX_BLOCK_BYTES // bytes_per_row) // sub * sub)
        tile_rows = min(tile_rows, rows)

    grid = (pl.cdiv(rows, tile_rows),)

    out2d = pl.pallas_call(
        _identity_kernel,
        out_shape=jax.ShapeDtypeStruct(x2d.shape, orig_dtype),
        grid=grid,
        in_specs=[pl.BlockSpec((tile_rows, cols), lambda i: (i, 0))],
        out_specs=pl.BlockSpec((tile_rows, cols), lambda i: (i, 0)),
        input_output_aliases={0: 0},
        compiler_params=pltpu.CompilerParams(
            dimension_semantics=("parallel",),
            vmem_limit_bytes=_VMEM_LIMIT_BYTES,
        ),
    )(x2d)

    out_flat = out2d.reshape(-1)
    if pad:
        out_flat = out_flat[:n]
    return out_flat.reshape(orig_shape)


if __name__ == "__main__":
    key = jax.random.PRNGKey(0)
    # Small NCHW-style input consistent with a generic layer: (2, 4, 16, 16).
    x = jax.random.normal(key, (2, 4, 16, 16), dtype=jnp.float32)

    fwd = jax.jit(dummy_layer_forward)
    y = fwd(x)
    jax.block_until_ready(y)

    assert y.shape == x.shape and y.dtype == x.dtype
    assert bool(jnp.array_equal(y, x))
    print("KERNEL_OK")
</pallas_src>

<mosaic_0001>
module attributes {stable_mosaic.version = 11 : i64} {
  func.func @_identity_kernel(%arg0: i32, %arg1: memref<1x2048xf32, #tpu.memory_space<vmem>>, %arg2: memref<1x2048xf32, #tpu.memory_space<vmem>>) attributes {dimension_semantics = [#tpu.dimension_semantics<parallel>], iteration_bounds = array<i64: 1>, scalar_prefetch = 0 : i64, scratch_operands = 0 : i64, tpu.core_type = #tpu.core_type<tc>, window_params = [{transform_indices = @transform_0, window_bounds = array<i64: 1, 2048>}, {transform_indices = @transform_1, window_bounds = array<i64: 1, 2048>}]} {
    %c0 = arith.constant 0 : index
    %c0_0 = arith.constant 0 : index
    %0 = vector.load %arg1[%c0, %c0_0] : memref<1x2048xf32, #tpu.memory_space<vmem>>, vector<1x2048xf32>
    %c0_1 = arith.constant 0 : index
    %c0_2 = arith.constant 0 : index
    %1 = vector.load %arg2[%c0_1, %c0_2] : memref<1x2048xf32, #tpu.memory_space<vmem>>, vector<1x2048xf32>
    tpu.vector_store %arg2[%c0_1, %c0_2], %0 {strides = array<i32>} : memref<1x2048xf32, #tpu.memory_space<vmem>>, vector<1x2048xf32>,
    return
  }
  func.func @transform_0(%arg0: i32) -> (i32, i32) {
    %c0_i32 = arith.constant 0 : i32
    %c0_i32_0 = arith.constant 0 : i32
    return %arg0, %c0_i32 : i32, i32
  }
  func.func @transform_1(%arg0: i32) -> (i32, i32) {
    %c0_i32 = arith.constant 0 : i32
    %c0_i32_0 = arith.constant 0 : i32
    return %arg0, %c0_i32 : i32, i32
  }
}

</mosaic_0001>

<llo_original>
// kernel: dummy_layer_forward.1
$region0: #{dummy_layer_forward.1}
  #allocation0 [shape = 'u32[]', space=smem, size = 0x4, offset = 0x4, fixed_abs, tag = 'smem constant byte address 0x4 - core index']
  #allocation1 [shape = 'u32[144,128]{1,0:T(1,128)}', space=vmem, size = 0x12000, scoped, tag = 'internal scratch']
  %s0 = inlined_call_operand.vmem [shape: f32[1,2048], index: 0, kind: input, shape index: {}, may-alias: {0,1}]
  %s1 = inlined_call_operand.vmem [shape: f32[1,2048], index: 1, kind: output, shape index: {}, may-alias: {0,1}]
  %s2 = sld [smem:[#allocation0]]
  $region14: #{dummy_layer_forward.1} parent=0
    _
  %s4 = ssub.s32 1, %s2
  %s5 = scalar_select 0, %s4, %s2
  // Predicated region
  $region2: #{dummy_layer_forward.1} parent=0 // pred_check
    _
  $region3: #{dummy_layer_forward.1} parent=0 // pred_check_branch
    %7 = sbr.rel (0) target = $region5
  $region4: #{dummy_layer_forward.1} parent=0 // pred_region
    _
  $region5: #{dummy_layer_forward.1} parent=0 // pred_fallthru
    _
  %v8 = vld [vmem:[%s0] sm:$0xff]
  %v9 = vld [vmem:[%s0 + $0x8] sm:$0xff]
  %10 = vst [vmem:[%s1] sm:$0xff] %v8
  %11 = vst [vmem:[%s1 + $0x8] sm:$0xff] %v9
  // Predicated region
  $region6: #{dummy_layer_forward.1} parent=0 // pred_check
    _
  $region7: #{dummy_layer_forward.1} parent=0 // pred_check_branch
    %13 = sbr.rel (0) target = $region9
  $region8: #{dummy_layer_forward.1} parent=0 // pred_region
    _
  $region9: #{dummy_layer_forward.1} parent=0 // pred_fallthru
    _
  // Predicated region
  $region10: #{dummy_layer_forward.1} parent=0 // pred_check
    _
  $region11: #{dummy_layer_forward.1} parent=0 // pred_check_branch
    %15 = sbr.rel (0) target = $region13
  $region12: #{dummy_layer_forward.1} parent=0 // pred_region
    _
  $region13: #{dummy_layer_forward.1} parent=0 // pred_fallthru
    _

</llo_original>
